<compile_context>
chip_gen: v5e
topology: v5e:2x2
jax: 0.10.0
libtpu: 0.0.40
codegen_flags: <defaults>
</compile_context>

<pallas_src>
import functools

import jax
import jax.numpy as jnp
from jax.experimental import pallas as pl
from jax.experimental.pallas import tpu as pltpu


def _round_up(v, m):
    return ((v + m - 1) // m) * m


def _vmem_capacity_bytes():
    # Trace-time HW query; fall back to the smallest per-TC VMEM (v7x, 64 MiB).
    try:
        return int(pltpu.get_tpu_info().vmem_capacity_bytes)
    except Exception:
        return 64 << 20


def _resident_spec(shape):
    # Constant-index blocks (weights / bias): single-buffered when supported,
    # halving their VMEM footprint (matters most under v7x's 64 MiB).
    index_map = lambda i: (0,) * len(shape)
    if hasattr(pl, "Buffered"):
        try:
            return pl.BlockSpec(shape, index_map, pipeline_mode=pl.Buffered(1))
        except TypeError:
            pass
    return pl.BlockSpec(shape, index_map)


def _densenet_top_kernel(x_ref, w_ref, b_ref, o_ref):
    # x_ref: (tm, Fp) f32   w_ref: (Fp, Cp) bf16   b_ref: (1, Cp) f32
    # o_ref: (tm, Cp) out_dtype
    # Cast activations to bf16 in-kernel (VPU op hidden under the DMA wait);
    # f32 MXU accumulation via preferred_element_type.
    logits = jnp.dot(
        x_ref[...].astype(jnp.bfloat16), w_ref[...],
        preferred_element_type=jnp.float32,
    ) + b_ref[...]                                   # bias broadcast over batch
    # Numerically-stable softmax over the lane axis; pad lanes carry a -1e30
    # bias so exp() underflows to 0 there and never affects the sum.
    m = jnp.max(logits, axis=-1, keepdims=True)
    e = jnp.exp(logits - m)
    s = jnp.sum(e, axis=-1, keepdims=True)
    o_ref[...] = (e * pl.reciprocal(s, approx=True)).astype(o_ref.dtype)


def prepare_densenet_top_params(w, b, *, f_align=256, c_align=128):
    """One-time weight/bias pad + bf16 cast (hoisted out of the call path).

    w: (F, C), b: (C,)  ->  w_p: (Fp, Cp) bf16,  b_p: (1, Cp) f32 (-1e30 pads).
    """
    F, C = w.shape
    Fp = _round_up(F, f_align)   # MXU-native contraction width (v6e/v7x 2x256^2)
    Cp = _round_up(C, c_align)   # lane-dense class dim
    w_p = jnp.zeros((Fp, Cp), jnp.bfloat16).at[:F, :C].set(w.astype(jnp.bfloat16))
    b_p = (
        jnp.full((1, Cp), -1e30, jnp.float32)
        .at[0, :C]
        .set(b.astype(jnp.float32))
    )
    return w_p, b_p


@functools.partial(jax.jit, static_argnames=("num_classes", "tm", "out_dtype"))
def densenet_top_apply(x, w_p, b_p, *, num_classes, tm=512,
                       out_dtype=jnp.float32):
    """x: (B, F) f32 -> softmax probabilities (B, num_classes) of out_dtype."""
    B, F = x.shape
    Fp, Cp = w_p.shape
    assert F <= Fp and num_classes <= Cp

    # Batch tile: multiple of 16 (sublane-safe for f32/bf16/o-dtype), and keep
    # the grid >= 2 steps whenever B allows so the "parallel" batch axis can be
    # sharded over both v7x TensorCores. No effect on v5e/v6e (1 TC).
    tm = max(16, (int(tm) // 16) * 16)
    half = max(16, _round_up(_round_up(B, 16) // 2, 16))
    tm = min(tm, half, _round_up(B, 16))
    Bp = _round_up(B, tm)

    # x stays f32 and untouched in the common case (B % tm == 0, F == Fp);
    # otherwise one zero-pad pass aligns the batch / contraction dims.
    if Bp != B or Fp != F:
        x_p = jnp.zeros((Bp, Fp), x.dtype).at[:B, :F].set(x)
    else:
        x_p = x

    grid = (Bp // tm,)
    out_bytes = jnp.dtype(out_dtype).itemsize

    cost = pl.CostEstimate(
        flops=2 * Bp * Fp * Cp,
        transcendentals=Bp * Cp,
        bytes_accessed=(x_p.size * x_p.dtype.itemsize + w_p.size * 2
                        + b_p.size * 4 + Bp * Cp * out_bytes),
    )

    # VMEM: single-buffered W + bias, double-buffered f32 x tile and out tile.
    vmem_bytes = (Fp * Cp * 2 + Cp * 4
                  + 2 * (tm * Fp * 4) + 2 * (tm * Cp * out_bytes))
    vmem_limit = int(
        min(max(2 * vmem_bytes, 16 << 20),
            max(16 << 20, int(0.6 * _vmem_capacity_bytes())))
    )

    # TODO(synk): for very wide heads (F*Cp*2 approaching the VMEM limit), add
    # a class-tiled grid axis with streamed weight blocks and an online softmax.
    out_p = pl.pallas_call(
        _densenet_top_kernel,
        out_shape=jax.ShapeDtypeStruct((Bp, Cp), out_dtype),
        grid_spec=pltpu.PrefetchScalarGridSpec(
            num_scalar_prefetch=0,
            grid=grid,
            in_specs=[
                pl.BlockSpec((tm, Fp), lambda i: (i, 0)),   # activations: tiled
                _resident_spec((Fp, Cp)),                   # weights: resident
                _resident_spec((1, Cp)),                    # bias: resident
            ],
            out_specs=pl.BlockSpec((tm, Cp), lambda i: (i, 0)),
        ),
        compiler_params=pltpu.CompilerParams(
            dimension_semantics=("parallel",),   # v7x: shard batch over 2 TCs
            vmem_limit_bytes=vmem_limit,
        ),
        cost_estimate=cost,
    )(x_p, w_p, b_p)

    return out_p[:B, :num_classes]


if __name__ == "__main__":
    # DenseNet classifier is nn.Linear(in_features, num_classes) + Softmax;
    # small synthetic shapes: batch=2, in_features=32, num_classes=8.
    B, F, C = 2, 32, 8
    key = jax.random.PRNGKey(0)
    kx, kw, kb = jax.random.split(key, 3)

    x = jax.random.normal(kx, (B, F), dtype=jnp.float32)
    # Deterministic synthetic "classifier" parameters (not a checkpoint load).
    w = jax.random.normal(kw, (F, C), dtype=jnp.float32) * 0.05
    b = jax.random.normal(kb, (C,), dtype=jnp.float32) * 0.01

    # One-time parameter prep (pad + bf16 cast hoisted out of the call path).
    w_p, b_p = jax.block_until_ready(prepare_densenet_top_params(w, b))

    out = jax.block_until_ready(densenet_top_apply(x, w_p, b_p, num_classes=C))

    # Reference check in plain JAX (f32); tolerance loosened for the bf16 GEMM
    # operands and the approximate EUP reciprocal.
    ref = jax.nn.softmax(x @ w + b, axis=-1)
    assert out.shape == (B, C)
    assert jnp.allclose(out, ref, atol=5e-3, rtol=5e-3)
    assert jnp.allclose(jnp.sum(out, axis=-1), jnp.ones((B,)), atol=5e-3)

    print("KERNEL_OK")
</pallas_src>

<mosaic_0001>
module attributes {stable_mosaic.version = 11 : i64} {
  func.func @_densenet_top_kernel(%arg0: i32, %arg1: memref<16x256xf32, #tpu.memory_space<vmem>>, %arg2: memref<256x128xbf16, #tpu.memory_space<vmem>>, %arg3: memref<1x128xf32, #tpu.memory_space<vmem>>, %arg4: memref<16x128xf32, #tpu.memory_space<vmem>>) attributes {dimension_semantics = [#tpu.dimension_semantics<parallel>], iteration_bounds = array<i64: 1>, scalar_prefetch = 0 : i64, scratch_operands = 0 : i64, tpu.core_type = #tpu.core_type<tc>, window_params = [{transform_indices = @transform_0, window_bounds = array<i64: 16, 256>}, {pipeline_mode = #tpu.pipeline_mode<synchronous>, transform_indices = @transform_1, window_bounds = array<i64: 256, 128>}, {pipeline_mode = #tpu.pipeline_mode<synchronous>, transform_indices = @transform_2, window_bounds = array<i64: 1, 128>}, {transform_indices = @transform_3, window_bounds = array<i64: 16, 128>}]} {
    %c0 = arith.constant 0 : index
    %c0_0 = arith.constant 0 : index
    %0 = vector.load %arg1[%c0, %c0_0] : memref<16x256xf32, #tpu.memory_space<vmem>>, vector<16x256xf32>
    %1 = arith.truncf %0 : vector<16x256xf32> to vector<16x256xbf16>
    %c0_1 = arith.constant 0 : index
    %c0_2 = arith.constant 0 : index
    %2 = vector.load %arg2[%c0_1, %c0_2] : memref<256x128xbf16, #tpu.memory_space<vmem>>, vector<256x128xbf16>
    %cst = arith.constant dense<0.000000e+00> : vector<16x128xf32>
    %3 = tpu.matmul %1, %2, %cst {dimension_numbers = #tpu.dot_dimension_numbers<[1], [0], [0], [1], [0, 0, 1, 1], [], []>} : vector<16x256xbf16>, vector<256x128xbf16>, vector<16x128xf32> -> vector<16x128xf32>
    %c0_3 = arith.constant 0 : index
    %c0_4 = arith.constant 0 : index
    %4 = vector.load %arg3[%c0_3, %c0_4] : memref<1x128xf32, #tpu.memory_space<vmem>>, vector<1x128xf32>
    %5 = vector.broadcast %4 : vector<1x128xf32> to vector<16x128xf32>
    %6 = arith.addf %3, %5 : vector<16x128xf32>
    %cst_5 = arith.constant dense<0xFF800000> : vector<16xf32>
    %7 = vector.multi_reduction <maximumf>, %6, %cst_5 [1] : vector<16x128xf32> to vector<16xf32>
    %8 = vector.shape_cast %7 : vector<16xf32> to vector<16x1xf32>
    %9 = vector.broadcast %8 : vector<16x1xf32> to vector<16x128xf32>
    %10 = arith.subf %6, %9 : vector<16x128xf32>
    %11 = math.exp %10 : vector<16x128xf32>
    %cst_6 = arith.constant dense<0.000000e+00> : vector<16xf32>
    %12 = vector.multi_reduction <add>, %11, %cst_6 [1] : vector<16x128xf32> to vector<16xf32>
    %13 = vector.shape_cast %12 : vector<16xf32> to vector<16x1xf32>
    %14 = tpu.reciprocal %13 {approx = true} : vector<16x1xf32> -> vector<16x1xf32>
    %15 = vector.broadcast %14 : vector<16x1xf32> to vector<16x128xf32>
    %16 = arith.mulf %11, %15 : vector<16x128xf32>
    %c0_7 = arith.constant 0 : index
    %c0_8 = arith.constant 0 : index
    %17 = vector.load %arg4[%c0_7, %c0_8] : memref<16x128xf32, #tpu.memory_space<vmem>>, vector<16x128xf32>
    tpu.vector_store %arg4[%c0_7, %c0_8], %16 {strides = array<i32>} : memref<16x128xf32, #tpu.memory_space<vmem>>, vector<16x128xf32>,
    return
  }
  func.func @transform_0(%arg0: i32) -> (i32, i32) {
    %c0_i32 = arith.constant 0 : i32
    %c0_i32_0 = arith.constant 0 : i32
    return %arg0, %c0_i32 : i32, i32
  }
  func.func @transform_1(%arg0: i32) -> (i32, i32) {
    %c0_i32 = arith.constant 0 : i32
    %c0_i32_0 = arith.constant 0 : i32
    %c0_i32_1 = arith.constant 0 : i32
    return %c0_i32, %c0_i32_0 : i32, i32
  }
  func.func @transform_2(%arg0: i32) -> (i32, i32) {
    %c0_i32 = arith.constant 0 : i32
    %c0_i32_0 = arith.constant 0 : i32
    %c0_i32_1 = arith.constant 0 : i32
    return %c0_i32, %c0_i32_0 : i32, i32
  }
  func.func @transform_3(%arg0: i32) -> (i32, i32) {
    %c0_i32 = arith.constant 0 : i32
    %c0_i32_0 = arith.constant 0 : i32
    return %arg0, %c0_i32 : i32, i32
  }
}

</mosaic_0001>

<llo_original>
// kernel: densenet_top_apply.1
$region0: #{densenet_top_apply.1}
  #allocation0 [shape = 'u32[]', space=smem, size = 0x4, offset = 0x4, fixed_abs, tag = 'smem constant byte address 0x4 - core index']
  #allocation1 [shape = 'u32[72,128]{1,0:T(1,128)}', space=vmem, size = 0x9000, scoped, tag = 'internal scratch']
  %s0 = inlined_call_operand.vmem [shape: f32[16,256], index: 0, kind: input, shape index: {}]
  %s1 = inlined_call_operand.hbm [shape: bf16[256,128], index: 1, kind: input, shape index: {}]
  %s2 = inlined_call_operand.vmem [shape: f32[1,128], index: 2, kind: input, shape index: {}]
  %s3 = inlined_call_operand.vmem [shape: f32[16,128], index: 3, kind: output, shape index: {}]
  %s4 = sld [smem:[#allocation0]]
  $region26: #{densenet_top_apply.1} parent=0
    _
  %s6 = ssub.s32 1, %s4
  %s7 = scalar_select 0, %s6, %s4
  $region1: #{densenet_top_apply.1} parent=0
    #allocation2 [shape = 'u8[65536]{0}', space=vmem, size = 0x10000, scoped, tag = 'input window, operand 1, single buffered']
    #allocation3 [shape = 's32[1]{0}', space=sflag, size = 0x4, scoped, tag = 'scoped memory for densenet_top_apply.1']
    %8 = vsyncpa [#allocation3], 0
    // Predicated region
    $region2: #{densenet_top_apply.1} parent=1 // pred_check
      _
    $region3: #{densenet_top_apply.1} parent=1 // pred_check_branch
      %10 = sbr.rel (0) target = $region5
    $region4: #{densenet_top_apply.1} parent=1 // pred_region
      _
    $region5: #{densenet_top_apply.1} parent=1 // pred_fallthru
      _
    // Predicated region
    $region6: #{densenet_top_apply.1} parent=1 // pred_check
      _
    $region7: #{densenet_top_apply.1} parent=1 // pred_check_branch
      %12 = sbr.rel (0) target = $region9
    $region8: #{densenet_top_apply.1} parent=1 // pred_region
      %14 = vsyncadd [#allocation3], 0
      %s15 = sshll.u32 %s1, 4
      %s16 = int_to_ptr.hbm [resolvable:$true] %s15
      %s17 = sshll.u32 [#allocation2], 4
      %s18 = int_to_ptr.vmem [resolvable:$true] %s17
      %23 = dma.hbm_to_vmem [thread:$0]  %s16, 2048, %s18, [#allocation3], 64, 64, 4
    $region9: #{densenet_top_apply.1} parent=1 // pred_fallthru
      _
    // Predicated region
    $region10: #{densenet_top_apply.1} parent=1 // pred_check
      _
    $region11: #{densenet_top_apply.1} parent=1 // pred_check_branch
      %25 = sbr.rel (0) target = $region13
    $region12: #{densenet_top_apply.1} parent=1 // pred_region
      _
    $region13: #{densenet_top_apply.1} parent=1 // pred_fallthru
      _
    // Predicated region
    $region14: #{densenet_top_apply.1} parent=1 // pred_check
      _
    $region15: #{densenet_top_apply.1} parent=1 // pred_check_branch
      %27 = sbr.rel (0) target = $region17
    $region16: #{densenet_top_apply.1} parent=1 // pred_region
      %29 = dma.done [#allocation3], 2048
    $region17: #{densenet_top_apply.1} parent=1 // pred_fallthru
      _
    %v30 = vld [vmem:[%s0] sm:$0xff]
    %v31 = vld [vmem:[%s0 + $0x8] sm:$0xff]
    %v32 = vld [vmem:[%s0 + $0x10] sm:$0xff]
    %v33 = vld [vmem:[%s0 + $0x18] sm:$0xff]
    %v34 = vpack.c.bf16 %v32, %v30
    %v35 = vpack.c.bf16 %v33, %v31
    %v36 = vld [vmem:[#allocation2] sm:$0xf]
    %v37 = vld [vmem:[#allocation2 + $0x4] sm:$0xf]
    %v38 = vld [vmem:[#allocation2 + $0x8] sm:$0xf]
    %v39 = vld [vmem:[#allocation2 + $0xc] sm:$0xf]
    %v40 = vld [vmem:[#allocation2 + $0x10] sm:$0xf]
    %v41 = vld [vmem:[#allocation2 + $0x14] sm:$0xf]
    %v42 = vld [vmem:[#allocation2 + $0x18] sm:$0xf]
    %v43 = vld [vmem:[#allocation2 + $0x1c] sm:$0xf]
    %v44 = vld [vmem:[#allocation2 + $0x20] sm:$0xf]
    %v45 = vld [vmem:[#allocation2 + $0x24] sm:$0xf]
    %v46 = vld [vmem:[#allocation2 + $0x28] sm:$0xf]
    %v47 = vld [vmem:[#allocation2 + $0x2c] sm:$0xf]
    %v48 = vld [vmem:[#allocation2 + $0x30] sm:$0xf]
    %v49 = vld [vmem:[#allocation2 + $0x34] sm:$0xf]
    %v50 = vld [vmem:[#allocation2 + $0x38] sm:$0xf]
    %v51 = vld [vmem:[#allocation2 + $0x3c] sm:$0xf]
    %v52 = vld [vmem:[#allocation2 + $0x40] sm:$0xf]
    %v53 = vld [vmem:[#allocation2 + $0x44] sm:$0xf]
    %v54 = vld [vmem:[#allocation2 + $0x48] sm:$0xf]
    %v55 = vld [vmem:[#allocation2 + $0x4c] sm:$0xf]
    %v56 = vld [vmem:[#allocation2 + $0x50] sm:$0xf]
    %v57 = vld [vmem:[#allocation2 + $0x54] sm:$0xf]
    %v58 = vld [vmem:[#allocation2 + $0x58] sm:$0xf]
    %v59 = vld [vmem:[#allocation2 + $0x5c] sm:$0xf]
    %v60 = vld [vmem:[#allocation2 + $0x60] sm:$0xf]
    %v61 = vld [vmem:[#allocation2 + $0x64] sm:$0xf]
    %v62 = vld [vmem:[#allocation2 + $0x68] sm:$0xf]
    %v63 = vld [vmem:[#allocation2 + $0x6c] sm:$0xf]
    %v64 = vld [vmem:[#allocation2 + $0x70] sm:$0xf]
    %v65 = vld [vmem:[#allocation2 + $0x74] sm:$0xf]
    %v66 = vld [vmem:[#allocation2 + $0x78] sm:$0xf]
    %v67 = vld [vmem:[#allocation2 + $0x7c] sm:$0xf]
    %v68 = vld [vmem:[%s2] sm:$0x1]
    %v70 = vperm.slane %v68, 0
    %v104 = vunpack.c.l.b16 %v36
    %v105 = vunpack.c.l.b16 %v37
    %v106 = vunpack.c.l.b16 %v38
    %v107 = vunpack.c.l.b16 %v39
    %v108 = vunpack.c.l.b16 %v40
    %v109 = vunpack.c.l.b16 %v41
    %v110 = vunpack.c.l.b16 %v42
    %v111 = vunpack.c.l.b16 %v43
    %v112 = vunpack.c.l.b16 %v44
    %v113 = vunpack.c.l.b16 %v45
    %v114 = vunpack.c.l.b16 %v46
    %v115 = vunpack.c.l.b16 %v47
    %v116 = vunpack.c.l.b16 %v48
    %v117 = vunpack.c.l.b16 %v49
    %v118 = vunpack.c.l.b16 %v50
    %v119 = vunpack.c.l.b16 %v51
    %v120 = vunpack.c.l.b16 %v52
    %v121 = vunpack.c.l.b16 %v53
    %v122 = vunpack.c.l.b16 %v54
    %v123 = vunpack.c.l.b16 %v55
    %v124 = vunpack.c.l.b16 %v56
    %v125 = vunpack.c.l.b16 %v57
    %v126 = vunpack.c.l.b16 %v58
    %v127 = vunpack.c.l.b16 %v59
    %v128 = vunpack.c.l.b16 %v60
    %v129 = vunpack.c.l.b16 %v61
    %v130 = vunpack.c.l.b16 %v62
    %v131 = vunpack.c.l.b16 %v63
    %v132 = vunpack.c.l.b16 %v64
    %v133 = vunpack.c.l.b16 %v65
    %v134 = vunpack.c.l.b16 %v66
    %v135 = vunpack.c.l.b16 %v67
    %v136 = vpack.c.b16 %v105, %v104
    %v137 = vpack.c.b16 %v107, %v106
    %v138 = vpack.c.b16 %v109, %v108
    %v139 = vpack.c.b16 %v111, %v110
    %v140 = vpack.c.b16 %v113, %v112
    %v141 = vpack.c.b16 %v115, %v114
    %v142 = vpack.c.b16 %v117, %v116
    %v143 = vpack.c.b16 %v119, %v118
    %v144 = vpack.c.b16 %v121, %v120
    %v145 = vpack.c.b16 %v123, %v122
    %v146 = vpack.c.b16 %v125, %v124
    %v147 = vpack.c.b16 %v127, %v126
    %v148 = vpack.c.b16 %v129, %v128
    %v149 = vpack.c.b16 %v131, %v130
    %v150 = vpack.c.b16 %v133, %v132
    %v151 = vpack.c.b16 %v135, %v134
    %168 = vmatpush.bf16.msra.mxu0 %v143
    %169 = vmatpush.bf16.msra.mxu0 %v142
    %170 = vmatpush.bf16.msra.mxu0 %v141
    %171 = vmatpush.bf16.msra.mxu0 %v140
    %172 = vmatpush.bf16.msra.mxu0 %v139
    %173 = vmatpush.bf16.msra.mxu0 %v138
    %174 = vmatpush.bf16.msra.mxu0 %v137
    %175 = vmatpush.bf16.msra.mxu0 %v136
    %176 = vmatmul.bf16.gmra.mxu0 %v34
    %v177 = vpop.f32.mrf.mxu0
    %v178 = vadd.f32 %v70, %v177
    %v179 = vpop.f32.mrf.mxu0
    %v180 = vadd.f32 %v70, %v179
    %181 = vdwg.mxu0
    %182 = vmatpush.bf16.msra.mxu0 %v151
    %183 = vmatpush.bf16.msra.mxu0 %v150
    %184 = vmatpush.bf16.msra.mxu0 %v149
    %185 = vmatpush.bf16.msra.mxu0 %v148
    %186 = vmatpush.bf16.msra.mxu0 %v147
    %187 = vmatpush.bf16.msra.mxu0 %v146
    %188 = vmatpush.bf16.msra.mxu0 %v145
    %189 = vmatpush.bf16.msra.mxu0 %v144
    %190 = vmatmul.bf16.gmra.mxu0 %v35
    %v191 = vpop.f32.mrf.mxu0
    %v192 = vadd.f32 %v178, %v191
    %v193 = vpop.f32.mrf.mxu0
    %v194 = vadd.f32 %v180, %v193
    %195 = vdwg.mxu0
    %196 = vmax.xlane.f32.xlu0 %v192
    %v197 = vpop.xlane.xlu0 %196
    %198 = vmax.xlane.f32.xlu0 %v194
    %v199 = vpop.xlane.xlu0 %198
    %v200 = vsub.f32 %v192, %v197
    %v201 = vsub.f32 %v194, %v199
    %v202 = vmul.f32 %v200, 1.442695
    %v203 = vpow.pop %v202
    %v204 = vmul.f32 %v201, 1.442695
    %v205 = vpow.pop %v204
    %206 = vadd.xlane.f32.xlu0 %v203
    %v207 = vpop.xlane.xlu0 %206
    %208 = vadd.xlane.f32.xlu0 %v205
    %v209 = vpop.xlane.xlu0 %208
    %v210 = vrcp.pop %v207
    %v211 = vrcp.pop %v209
    %v212 = vmul.f32 %v203, %v210
    %v213 = vmul.f32 %v205, %v211
    %214 = vst [vmem:[%s3] sm:$0xff] %v212
    %215 = vst [vmem:[%s3 + $0x8] sm:$0xff] %v213
    // Predicated region
    $region18: #{densenet_top_apply.1} parent=1 // pred_check
      _
    $region19: #{densenet_top_apply.1} parent=1 // pred_check_branch
      %217 = sbr.rel (0) target = $region21
    $region20: #{densenet_top_apply.1} parent=1 // pred_region
      _
    $region21: #{densenet_top_apply.1} parent=1 // pred_fallthru
      _
    // Predicated region
    $region22: #{densenet_top_apply.1} parent=1 // pred_check
      _
    $region23: #{densenet_top_apply.1} parent=1 // pred_check_branch
      %219 = sbr.rel (0) target = $region25
    $region24: #{densenet_top_apply.1} parent=1 // pred_region
      _
    $region25: #{densenet_top_apply.1} parent=1 // pred_fallthru
      _
    %220 = vsyncpa [#allocation3], 1

</llo_original>
